<compile_context>
chip_gen: v5e
topology: v5e:2x2
jax: 0.10.0
libtpu: 0.0.40
codegen_flags: <defaults>
</compile_context>

<pallas_src>
import jax
import jax.numpy as jnp
from jax.experimental import pallas as pl
from jax.experimental.pallas import tpu as pltpu


def _round_up(x: int, m: int) -> int:
    return ((x + m - 1) // m) * m


def _vmem_capacity_bytes(default: int = 64 << 20) -> int:
    """Best-effort per-core VMEM capacity query (host-side, trace-time).

    Falls back to a conservative 64 MiB (v7x-sized) so tiles are valid on
    every generation if the query is unavailable."""
    try:
        cap = int(getattr(pltpu.get_tpu_info(), "vmem_capacity_bytes", default))
        return cap if cap > 0 else default
    except Exception:  # noqa: BLE001 - host-side query only, never during lowering
        return default


def _encoder_kernel(x_ref, w_ref, b_ref, o_ref):
    # x_ref: (tm, dim) in x's native dtype (cast in-kernel: saves a whole
    #        HBM read+write pass vs. casting in the wrapper).
    # w_ref: (dim, tn) compute dtype      b_ref: (1, tn) f32
    # o_ref: (tm, tn) out dtype, tn a multiple of 128 (lane-dense stores).
    x = x_ref[...].astype(w_ref.dtype)
    acc = jnp.dot(x, w_ref[...], preferred_element_type=jnp.float32)
    o_ref[...] = (acc + b_ref[...]).astype(o_ref.dtype)


def prepare_encoder_params(weight, bias, *, compute_dtype=jnp.bfloat16):
    """Hoist the per-call transpose / pad-to-128 / cast out of the hot path.

    weight: (dim_embed, dim, 1) Conv1d weight; bias: (dim_embed,).
    Returns (w_p: (dim, n_pad) compute_dtype, b_p: (1, n_pad) f32, dim_embed).
    """
    dim_embed, dim = weight.shape[0], weight.shape[1]
    n_pad = max(128, _round_up(dim_embed, 128))        # lane-dense output width
    w_t = weight.reshape(dim_embed, dim).T             # (dim, dim_embed)
    w_p = jnp.zeros((dim, n_pad), compute_dtype).at[:, :dim_embed].set(
        w_t.astype(compute_dtype))
    b_p = jnp.zeros((1, n_pad), jnp.float32).at[:, :dim_embed].set(
        bias.astype(jnp.float32).reshape(1, dim_embed))
    return w_p, b_p, dim_embed


def encoder_forward_prepared(x, w_p, b_p, dim_embed, *,
                             tile_rows=None, tile_n=None, out_dtype=None):
    """x: (B, L, dim); w_p/b_p from prepare_encoder_params.

    Returns (B, L, dim_embed) matching Encoder.forward semantics."""
    B, L, dim = x.shape
    assert w_p.shape[0] == dim
    n_pad = w_p.shape[1]
    out_dtype = x.dtype if out_dtype is None else out_dtype

    rows = B * L
    x2 = x.reshape(rows, dim)                 # contiguous reshape: no HBM copy

    # ---- generation-aware default tiles ----
    vmem_cap = _vmem_capacity_bytes()
    small_vmem = vmem_cap <= (64 << 20)       # v7x (or unknown hardware)
    if tile_rows is None:
        tile_rows = 512 if small_vmem else 1024
    if tile_n is None:
        tile_n = 1024 if small_vmem else 2048  # multiples of 256 (MXU width)

    tm = min(tile_rows, _round_up(rows, 8))    # sublane-aligned row tile
    tn = n_pad if n_pad <= tile_n else tile_n  # lane-dense (multiple of 128)

    x_isz = jnp.dtype(x.dtype).itemsize
    w_isz = jnp.dtype(w_p.dtype).itemsize
    o_isz = jnp.dtype(out_dtype).itemsize

    def _pb(r, c, isz):                        # physical (8,128)-padded bytes
        return _round_up(max(r, 1), 8) * _round_up(max(c, 1), 128) * isz

    def _needed(tm_, tn_):
        return (2 * _pb(tm_, dim, x_isz)       # x blocks (double-buffered)
                + 2 * _pb(dim, tn_, w_isz)     # weight blocks
                + 2 * _pb(1, tn_, 4)           # bias blocks
                + 2 * _pb(tm_, tn_, o_isz)     # output blocks
                + 2 * _pb(tm_, tn_, 4))        # in-kernel f32 acc/bias temps

    budget = vmem_cap * 3 // 4                 # headroom: ~48 MiB on v7x
    while _needed(tm, tn) > budget:
        if tn > 256:
            tn = max(256, tn // 2)
        elif tm > 64:
            tm = max(64, tm // 2)
        else:
            break
    # TODO(synk): for very large `dim`, add a K grid axis ("arbitrary") with an
    # f32 VMEM accumulator (P3) instead of only shrinking tm/tn.

    num_rows = pl.cdiv(rows, tm)
    num_n = pl.cdiv(n_pad, tn)

    cost = pl.CostEstimate(
        flops=2 * rows * dim * n_pad,
        transcendentals=0,
        bytes_accessed=(rows * dim * x_isz + dim * n_pad * w_isz
                        + n_pad * 4 + rows * n_pad * o_isz),
    )
    # Explicit scoped-VMEM limit (required on v5e, whose default is 16 MiB);
    # sized from the actual blocks + ~4 MiB Mosaic internal scratch headroom,
    # never above the 75%-of-capacity budget.
    vmem_limit = int(min(max(_needed(tm, tn) + (4 << 20), 16 << 20), budget))

    # Grid: rows are the fastest-varying (last) axis so the weight/bias block
    # index is unchanged across the inner loop -> Pallas skips re-fetching it.
    grid_spec = pl.GridSpec(
        grid=(num_n, num_rows),
        in_specs=[
            pl.BlockSpec((tm, dim), lambda j, i: (i, 0)),   # x (native dtype)
            pl.BlockSpec((dim, tn), lambda j, i: (0, j)),   # weight
            pl.BlockSpec((1, tn), lambda j, i: (0, j)),     # bias
        ],
        out_specs=pl.BlockSpec((tm, tn), lambda j, i: (i, j)),
    )

    out2 = pl.pallas_call(
        _encoder_kernel,
        out_shape=jax.ShapeDtypeStruct((rows, n_pad), out_dtype),
        grid_spec=grid_spec,
        compiler_params=pltpu.CompilerParams(
            dimension_semantics=("parallel", "parallel"),
            vmem_limit_bytes=vmem_limit),
        cost_estimate=cost,
    )(x2, w_p, b_p)

    if n_pad != dim_embed:                     # only when dim_embed % 128 != 0
        out2 = out2[:, :dim_embed]
    return out2.reshape(B, L, dim_embed)


def encoder_forward(x, weight, bias, *, tile_rows=None, tile_n=None,
                    compute_dtype=jnp.bfloat16, out_dtype=None):
    """Convenience wrapper: x (B, L, dim); weight (dim_embed, dim, 1); bias (dim_embed,)."""
    w_p, b_p, dim_embed = prepare_encoder_params(
        weight, bias, compute_dtype=compute_dtype)
    return encoder_forward_prepared(
        x, w_p, b_p, dim_embed, tile_rows=tile_rows, tile_n=tile_n,
        out_dtype=out_dtype)


if __name__ == "__main__":
    # Small shapes consistent with the module: batch=2, seq=8, dim=4, dim_embed=32.
    B, L, dim, dim_embed = 2, 8, 4, 32

    key = jax.random.PRNGKey(0)
    kx, kw, kb = jax.random.split(key, 3)

    x = jax.random.normal(kx, (B, L, dim), dtype=jnp.float32)
    # Conv1d weight shape (dim_embed, dim, 1), bias shape (dim_embed,).
    weight = jax.random.normal(kw, (dim_embed, dim, 1), dtype=jnp.float32) * 0.1
    bias = jax.random.normal(kb, (dim_embed,), dtype=jnp.float32) * 0.1

    ref = jnp.einsum("bld,ed->ble", x, weight[:, :, 0]) + bias

    # f32 compute path: matches the reference closely (MXU f32 accumulation).
    out_f32 = encoder_forward(x, weight, bias, compute_dtype=jnp.float32)
    jax.block_until_ready(out_f32)
    assert out_f32.shape == (B, L, dim_embed)
    assert jnp.allclose(out_f32, ref, atol=1e-5, rtol=1e-5)

    # Default fast path: x read at f32 (cast to bf16 in-kernel), bf16 weights,
    # f32 MXU accumulation + f32 bias add, f32 output.
    out_bf16 = encoder_forward(x, weight, bias)
    jax.block_until_ready(out_bf16)
    assert out_bf16.shape == (B, L, dim_embed)
    assert jnp.allclose(out_bf16, ref, atol=2e-2, rtol=2e-2)

    print("KERNEL_OK")
</pallas_src>

<mosaic_0001>
module attributes {stable_mosaic.version = 11 : i64} {
  func.func @_encoder_kernel(%arg0: i32, %arg1: i32, %arg2: memref<16x4xf32, #tpu.memory_space<vmem>>, %arg3: memref<4x128xf32, #tpu.memory_space<vmem>>, %arg4: memref<1x128xf32, #tpu.memory_space<vmem>>, %arg5: memref<16x128xf32, #tpu.memory_space<vmem>>) attributes {dimension_semantics = [#tpu.dimension_semantics<parallel>, #tpu.dimension_semantics<parallel>], iteration_bounds = array<i64: 1, 1>, scalar_prefetch = 0 : i64, scratch_operands = 0 : i64, tpu.core_type = #tpu.core_type<tc>, window_params = [{transform_indices = @transform_0, window_bounds = array<i64: 16, 4>}, {transform_indices = @transform_1, window_bounds = array<i64: 4, 128>}, {transform_indices = @transform_2, window_bounds = array<i64: 1, 128>}, {transform_indices = @transform_3, window_bounds = array<i64: 16, 128>}]} {
    %c0 = arith.constant 0 : index
    %c0_0 = arith.constant 0 : index
    %0 = vector.load %arg2[%c0, %c0_0] : memref<16x4xf32, #tpu.memory_space<vmem>>, vector<16x4xf32>
    %c0_1 = arith.constant 0 : index
    %c0_2 = arith.constant 0 : index
    %1 = vector.load %arg3[%c0_1, %c0_2] : memref<4x128xf32, #tpu.memory_space<vmem>>, vector<4x128xf32>
    %cst = arith.constant dense<0.000000e+00> : vector<16x128xf32>
    %2 = tpu.matmul %0, %1, %cst {dimension_numbers = #tpu.dot_dimension_numbers<[1], [0], [0], [1], [0, 0, 1, 1], [], []>} : vector<16x4xf32>, vector<4x128xf32>, vector<16x128xf32> -> vector<16x128xf32>
    %c0_3 = arith.constant 0 : index
    %c0_4 = arith.constant 0 : index
    %3 = vector.load %arg4[%c0_3, %c0_4] : memref<1x128xf32, #tpu.memory_space<vmem>>, vector<1x128xf32>
    %4 = vector.broadcast %3 : vector<1x128xf32> to vector<16x128xf32>
    %5 = arith.addf %2, %4 : vector<16x128xf32>
    %c0_5 = arith.constant 0 : index
    %c0_6 = arith.constant 0 : index
    %6 = vector.load %arg5[%c0_5, %c0_6] : memref<16x128xf32, #tpu.memory_space<vmem>>, vector<16x128xf32>
    tpu.vector_store %arg5[%c0_5, %c0_6], %5 {strides = array<i32>} : memref<16x128xf32, #tpu.memory_space<vmem>>, vector<16x128xf32>,
    return
  }
  func.func @transform_0(%arg0: i32, %arg1: i32) -> (i32, i32) {
    %c0_i32 = arith.constant 0 : i32
    %c0_i32_0 = arith.constant 0 : i32
    return %arg1, %c0_i32 : i32, i32
  }
  func.func @transform_1(%arg0: i32, %arg1: i32) -> (i32, i32) {
    %c0_i32 = arith.constant 0 : i32
    %c0_i32_0 = arith.constant 0 : i32
    return %c0_i32, %arg0 : i32, i32
  }
  func.func @transform_2(%arg0: i32, %arg1: i32) -> (i32, i32) {
    %c0_i32 = arith.constant 0 : i32
    %c0_i32_0 = arith.constant 0 : i32
    return %c0_i32, %arg0 : i32, i32
  }
  func.func @transform_3(%arg0: i32, %arg1: i32) -> (i32, i32) {
    %c0_i32 = arith.constant 0 : i32
    return %arg1, %arg0 : i32, i32
  }
}

</mosaic_0001>

<llo_original>
// kernel: tpu_custom_call.1
$region0: #{tpu_custom_call.1}
  #allocation0 [shape = 'u32[]', space=smem, size = 0x4, offset = 0x4, fixed_abs, tag = 'smem constant byte address 0x4 - core index']
  #allocation1 [shape = 'u32[72,128]{1,0:T(1,128)}', space=vmem, size = 0x9000, scoped, tag = 'internal scratch']
  %s0 = inlined_call_operand.vmem [shape: f32[16,4], index: 0, kind: input, shape index: {}]
  %s1 = inlined_call_operand.vmem [shape: f32[4,128], index: 1, kind: input, shape index: {}]
  %s2 = inlined_call_operand.vmem [shape: f32[1,128], index: 2, kind: input, shape index: {}]
  %s3 = inlined_call_operand.hbm [shape: f32[16,128], index: 3, kind: output, shape index: {}]
  %s4 = sld [smem:[#allocation0]]
  $region22: #{tpu_custom_call.1} parent=0
    _
  %s6 = ssub.s32 1, %s4
  %s7 = scalar_select 0, %s6, %s4
  $region1: #{tpu_custom_call.1} parent=0
    #allocation2 [shape = 'u8[8192]{0}', space=vmem, size = 0x2000, scoped, tag = 'output window, operand 0, single buffered']
    #allocation3 [shape = 's32[1]{0}', space=sflag, size = 0x4, scoped, tag = 'scoped memory for tpu_custom_call.1']
    %8 = vsyncpa [#allocation3], 0
    // Predicated region
    $region2: #{tpu_custom_call.1} parent=1 // pred_check
      _
    $region3: #{tpu_custom_call.1} parent=1 // pred_check_branch
      %10 = sbr.rel (0) target = $region5
    $region4: #{tpu_custom_call.1} parent=1 // pred_region
      _
    $region5: #{tpu_custom_call.1} parent=1 // pred_fallthru
      _
    // Predicated region
    $region6: #{tpu_custom_call.1} parent=1 // pred_check
      _
    $region7: #{tpu_custom_call.1} parent=1 // pred_check_branch
      %12 = sbr.rel (0) target = $region9
    $region8: #{tpu_custom_call.1} parent=1 // pred_region
      _
    $region9: #{tpu_custom_call.1} parent=1 // pred_fallthru
      _
    // Predicated region
    $region10: #{tpu_custom_call.1} parent=1 // pred_check
      _
    $region11: #{tpu_custom_call.1} parent=1 // pred_check_branch
      %14 = sbr.rel (0) target = $region13
    $region12: #{tpu_custom_call.1} parent=1 // pred_region
      _
    $region13: #{tpu_custom_call.1} parent=1 // pred_fallthru
      _
    %v15 = vld [vmem:[%s0] sm:$0xff]
    %v16 = vld [vmem:[%s0 + $0x8] sm:$0xff]
    %v17 = vld [vmem:[%s1] sm:$0xf]
    %v18 = vld [vmem:[%s2] sm:$0x1]
    %v20 = vperm.slane %v18, 0
    %vm22 = vcmask 31744
    %v24 = vsel %vm22, %v15, 0
    %v27 = vsel %vm22, %v16, 0
    %vm29 = vcmask 1043456
    %v31 = vsel %vm29, %v17, 0
    %33 = vmatpush.msra.mxu0 0.0
    %34 = vmatpush.msra.mxu0 0.0
    %35 = vmatpush.msra.mxu0 0.0
    %36 = vmatpush.msra.mxu0 0.0
    %37 = vmatpush.msra.mxu0 0.0
    %38 = vmatpush.msra.mxu0 0.0
    %39 = vmatpush.msra.mxu0 0.0
    %40 = vmatpush.msra.mxu0 0.0
    %41 = vmatpush.msra.mxu0 0.0
    %42 = vmatpush.msra.mxu0 0.0
    %43 = vmatpush.msra.mxu0 0.0
    %44 = vmatpush.msra.mxu0 0.0
    %45 = vmatpush.msra.mxu0 0.0
    %46 = vmatpush.msra.mxu0 0.0
    %47 = vmatpush.msra.mxu0 0.0
    %48 = vmatpush.msra.mxu0 %v31
    %49 = vmatmul.f32.gmra.mxu0 %v24
    %v50 = vpop.f32.mrf.mxu0
    %v51 = vadd.f32 %v20, %v50
    %52 = vmatmul.f32.gmra.mxu0 %v27
    %v53 = vpop.f32.mrf.mxu0
    %v54 = vadd.f32 %v20, %v53
    %55 = vdwg.mxu0
    %56 = vst [vmem:[#allocation2] sm:$0xff] %v51
    %57 = vst [vmem:[#allocation2 + $0x8] sm:$0xff] %v54
    // Predicated region
    $region14: #{tpu_custom_call.1} parent=1 // pred_check
      _
    $region15: #{tpu_custom_call.1} parent=1 // pred_check_branch
      %59 = sbr.rel (0) target = $region17
    $region16: #{tpu_custom_call.1} parent=1 // pred_region
      %61 = vsyncadd [#allocation3], 0
      %s62 = sshll.u32 [#allocation2], 4
      %s63 = int_to_ptr.vmem [resolvable:$true] %s62
      %s64 = sshll.u32 %s3, 4
      %s65 = int_to_ptr.hbm [resolvable:$true] %s64
      %70 = dma.vmem_to_hbm [thread:$0]  %s63, 256, %s65, [#allocation3], 128, 128, 8
    $region17: #{tpu_custom_call.1} parent=1 // pred_fallthru
      _
    // Predicated region
    $region18: #{tpu_custom_call.1} parent=1 // pred_check
      _
    $region19: #{tpu_custom_call.1} parent=1 // pred_check_branch
      %72 = sbr.rel (0) target = $region21
    $region20: #{tpu_custom_call.1} parent=1 // pred_region
      %74 = dma.done [#allocation3], 256
    $region21: #{tpu_custom_call.1} parent=1 // pred_fallthru
      _
    %75 = vsyncpa [#allocation3], 1

</llo_original>
